<compile_context>
chip_gen: v7x
topology: tpu7x:2x2x1
jax: 0.10.0
libtpu: 0.0.40
codegen_flags: <defaults>
</compile_context>

<pallas_src>
import functools

import jax
import jax.numpy as jnp
from jax import lax
from jax.experimental import pallas as pl
from jax.experimental.pallas import tpu as pltpu

EPS = 1e-5
MiB = 1024 * 1024


def _round_up(x, m):
    return -(-x // m) * m


# -----------------------------------------------------------------------------
# Kernels: fused single-pass mean / E[x^2], f32 accumulation, no xc temporary.
# -----------------------------------------------------------------------------
def _ln_withbias_kernel(x_ref, w_ref, b_ref, o_ref, *, inv_c):
    x = x_ref[...].astype(jnp.float32)                    # (C, T)
    s1 = jnp.sum(x, axis=0, keepdims=True)                # (1, T) sublane reduce
    s2 = jnp.sum(x * x, axis=0, keepdims=True)            # same pass
    mu = s1 * inv_c
    var = jnp.maximum(s2 * inv_c - mu * mu, 0.0)          # clamp tiny cancellation
    inv = lax.rsqrt(var + EPS)                            # EUP slot
    w = w_ref[...].astype(jnp.float32)                    # (C, 1) -> lane broadcast
    b = b_ref[...].astype(jnp.float32)                    # (C, 1)
    o_ref[...] = ((x - mu) * inv * w + b).astype(o_ref.dtype)


def _ln_biasfree_kernel(x_ref, w_ref, o_ref, *, inv_c):
    x = x_ref[...].astype(jnp.float32)                    # (C, T)
    s1 = jnp.sum(x, axis=0, keepdims=True)
    s2 = jnp.sum(x * x, axis=0, keepdims=True)
    mu = s1 * inv_c
    var = jnp.maximum(s2 * inv_c - mu * mu, 0.0)
    inv = lax.rsqrt(var + EPS)
    w = w_ref[...].astype(jnp.float32)
    # NOTE: BiasFree variant does NOT subtract the mean from x (matches torch),
    # but the variance IS computed about the mean.
    o_ref[...] = (x * inv * w).astype(o_ref.dtype)


# -----------------------------------------------------------------------------
# Per-chip budgets and lane-tile selection.
# -----------------------------------------------------------------------------
def _chip_budgets():
    """Returns (vmem_limit_bytes, target_block_bytes) for this generation."""
    cap = None
    try:
        cap = int(pltpu.get_tpu_info().vmem_capacity_bytes)
    except Exception:
        cap = None
    if cap is not None and cap >= 96 * MiB:
        # v5e / v6e: 128 MiB physical VMEM -> big blocks, raise the scoped limit.
        return 64 * MiB, 8 * MiB
    # v7x (64 MiB physical) or unknown: keep blocks ~4 MiB and the limit at 48 MiB
    # so in+out double buffers plus f32 temporaries never OOM.
    return 48 * MiB, 4 * MiB


def _choose_lane_tile(hw_pad, c, target_block_bytes, batch):
    """Pick the lane (spatial) tile width T (multiple of 128, sized by the f32
    compute footprint C*T*4 <= target_block_bytes)."""
    assert hw_pad % 128 == 0
    cap = max(128, (target_block_bytes // (c * 4)) // 128 * 128)
    cap = min(cap, hw_pad)
    # Keep >= 2 total grid steps so both v7x TensorCores get work at B == 1.
    if batch == 1 and cap >= hw_pad and hw_pad >= 256:
        cap = _round_up(hw_pad // 2, 128)
    if hw_pad % cap == 0:
        return cap
    # Prefer a 128-multiple exact divisor close to the cap (no ragged tail);
    # otherwise accept a ragged last block (per-lane stats are independent, so
    # the masked tail cannot contaminate valid lanes).
    lo = max(128, (3 * cap) // 4)
    t = cap
    while t >= lo:
        if hw_pad % t == 0:
            return t
        t -= 128
    return cap


# -----------------------------------------------------------------------------
# pallas_call wrapper.
# -----------------------------------------------------------------------------
def _layernorm_pallas_3d(x3, weight, bias, layernorm_type):
    """x3: (B, C, HW) with HW a multiple of 128. Normalizes over C per lane."""
    B, C, HW = x3.shape
    vmem_limit, target_block = _chip_budgets()
    T = _choose_lane_tile(HW, C, target_block, B)
    n_t = pl.cdiv(HW, T)  # ragged last block allowed
    grid = (B, n_t)

    x_spec = pl.BlockSpec((pl.Squeezed(), C, T), lambda b, t: (b, 0, t))
    p_spec = pl.BlockSpec((C, 1), lambda b, t: (0, 0))
    o_spec = pl.BlockSpec((pl.Squeezed(), C, T), lambda b, t: (b, 0, t))

    cparams = pltpu.CompilerParams(
        dimension_semantics=("parallel", "parallel"),
        vmem_limit_bytes=vmem_limit,
    )

    w2 = weight.reshape(C, 1)
    if layernorm_type == "BiasFree":
        kern = functools.partial(_ln_biasfree_kernel, inv_c=1.0 / C)
        in_specs = [x_spec, p_spec]
        args = (x3, w2)
    else:
        kern = functools.partial(_ln_withbias_kernel, inv_c=1.0 / C)
        in_specs = [x_spec, p_spec, p_spec]
        args = (x3, w2, bias.reshape(C, 1))

    return pl.pallas_call(
        kern,
        out_shape=jax.ShapeDtypeStruct((B, C, HW), x3.dtype),
        grid_spec=pltpu.PrefetchScalarGridSpec(
            num_scalar_prefetch=0, grid=grid,
            in_specs=in_specs, out_specs=o_spec),
        compiler_params=cparams,
    )(*args)


@functools.partial(jax.jit, static_argnames=("layernorm_type",))
def layernorm_nchw(x, weight, bias, layernorm_type="WithBias"):
    """Equivalent of LayerNorm(dim, LayerNorm_type).forward(x) with x NCHW."""
    B, C, H, W = x.shape
    HW = H * W
    # (B, C, H, W) -> (B, C, H*W) is a contiguous view: no HBM traffic.
    x3 = x.reshape(B, C, HW)
    HW_pad = _round_up(HW, 128)
    if HW_pad != HW:
        # Rare non-128-multiple spatial extents pay one pad copy; all
        # DecoderNet2 resolutions (192^2 / 96^2 / 48^2) take the zero-copy path.
        # Zero-padded lanes compute harmless finite stats and are sliced off.
        x3 = jnp.pad(x3, ((0, 0), (0, 0), (0, HW_pad - HW)))
    y3 = _layernorm_pallas_3d(x3, weight, bias, layernorm_type)
    if HW_pad != HW:
        y3 = y3[:, :, :HW]
    return y3.reshape(B, C, H, W)


# -----------------------------------------------------------------------------
# Pure-JAX reference (matches the PyTorch module).
# -----------------------------------------------------------------------------
def _reference_nchw(x, weight, bias, layernorm_type="WithBias"):
    xf = x.astype(jnp.float32)
    x3 = jnp.transpose(xf, (0, 2, 3, 1))  # b h w c
    mu = jnp.mean(x3, axis=-1, keepdims=True)
    var = jnp.mean((x3 - mu) ** 2, axis=-1, keepdims=True)
    inv = 1.0 / jnp.sqrt(var + EPS)
    if layernorm_type == "BiasFree":
        y3 = x3 * inv * weight.astype(jnp.float32)
    else:
        y3 = (x3 - mu) * inv * weight.astype(jnp.float32) + bias.astype(jnp.float32)
    return jnp.transpose(y3, (0, 3, 1, 2)).astype(x.dtype)


if __name__ == "__main__":
    key = jax.random.PRNGKey(0)
    k1, k2, k3, k4, k5, k6 = jax.random.split(key, 6)

    # Shapes mirror DecoderNet2 level-1 (dim = 64) at a small spatial size.
    B, C, H, W = 2, 64, 16, 16
    x = jax.random.normal(k1, (B, C, H, W), dtype=jnp.float32)
    weight = jnp.ones((C,), jnp.float32) + 0.01 * jax.random.normal(k2, (C,))
    bias = jnp.zeros((C,), jnp.float32) + 0.01 * jax.random.normal(k3, (C,))

    # WithBias (the standard nn.LayerNorm-style path used inside DecoderNet2).
    y = layernorm_nchw(x, weight, bias, layernorm_type="WithBias")
    jax.block_until_ready(y)
    y_ref = _reference_nchw(x, weight, bias, "WithBias")
    assert jnp.allclose(y, y_ref, atol=5e-5, rtol=5e-5), "WithBias mismatch"

    # BiasFree variant (DAST custom LayerNorm).
    y_bf = layernorm_nchw(x, weight, bias, layernorm_type="BiasFree")
    jax.block_until_ready(y_bf)
    y_bf_ref = _reference_nchw(x, weight, bias, "BiasFree")
    assert jnp.allclose(y_bf, y_bf_ref, atol=5e-5, rtol=5e-5), "BiasFree mismatch"

    # Spatial extent not a multiple of 128 -> wrapper pad + slice (lane-dense
    # stores inside the kernel, no whole-row masked block).
    x_odd = jax.random.normal(k4, (1, C, 13, 13), dtype=jnp.float32)
    y_odd = layernorm_nchw(x_odd, weight, bias, layernorm_type="WithBias")
    jax.block_until_ready(y_odd)
    y_odd_ref = _reference_nchw(x_odd, weight, bias, "WithBias")
    assert jnp.allclose(y_odd, y_odd_ref, atol=5e-5, rtol=5e-5), "odd-HW mismatch"

    # Ragged lane tail (T does not divide H*W): HW = 640 -> blocks [384, 256].
    x_rag = jax.random.normal(k5, (1, C, 20, 32), dtype=jnp.float32)
    y_rag = layernorm_nchw(x_rag, weight, bias, layernorm_type="WithBias")
    jax.block_until_ready(y_rag)
    y_rag_ref = _reference_nchw(x_rag, weight, bias, "WithBias")
    assert jnp.allclose(y_rag, y_rag_ref, atol=5e-5, rtol=5e-5), "ragged mismatch"

    # bf16 I/O (compute upcast to f32 inside the kernel), level-2 dim = 128.
    C2 = 128
    xb = jax.random.normal(k6, (1, C2, 16, 16), dtype=jnp.float32).astype(jnp.bfloat16)
    w2 = jnp.ones((C2,), jnp.float32)
    b2 = jnp.zeros((C2,), jnp.float32)
    yb = layernorm_nchw(xb, w2, b2, layernorm_type="WithBias")
    jax.block_until_ready(yb)
    yb_ref = _reference_nchw(xb, w2, b2, "WithBias")
    assert jnp.allclose(yb.astype(jnp.float32), yb_ref.astype(jnp.float32),
                        atol=3e-2, rtol=3e-2), "bf16 mismatch"

    print("KERNEL_OK")
</pallas_src>

<mosaic_0001>
module attributes {stable_mosaic.version = 11 : i64} {
  func.func @_ln_withbias_kernel(%arg0: i32, %arg1: i32, %arg2: memref<1x64x256xf32, #tpu.memory_space<vmem>>, %arg3: memref<64x1xf32, #tpu.memory_space<vmem>>, %arg4: memref<64x1xf32, #tpu.memory_space<vmem>>, %arg5: memref<1x64x256xf32, #tpu.memory_space<vmem>>) attributes {dimension_semantics = [#tpu.dimension_semantics<parallel>, #tpu.dimension_semantics<parallel>], iteration_bounds = array<i64: 2, 1>, scalar_prefetch = 0 : i64, scratch_operands = 0 : i64, tpu.core_type = #tpu.core_type<tc>, window_params = [{transform_indices = @transform_0, window_bounds = array<i64: 1, 64, 256>}, {pipeline_mode = #tpu.pipeline_mode<synchronous>, transform_indices = @transform_1, window_bounds = array<i64: 64, 1>}, {pipeline_mode = #tpu.pipeline_mode<synchronous>, transform_indices = @transform_2, window_bounds = array<i64: 64, 1>}, {transform_indices = @transform_3, window_bounds = array<i64: 1, 64, 256>}]} {
    %c0 = arith.constant 0 : index
    %c0_0 = arith.constant 0 : index
    %c0_1 = arith.constant 0 : index
    %0 = vector.load %arg2[%c0, %c0_0, %c0_1] : memref<1x64x256xf32, #tpu.memory_space<vmem>>, vector<1x64x256xf32>
    %1 = vector.shape_cast %0 : vector<1x64x256xf32> to vector<64x256xf32>
    %cst = arith.constant dense<0.000000e+00> : vector<256xf32>
    %2 = vector.multi_reduction <add>, %1, %cst [0] : vector<64x256xf32> to vector<256xf32>
    %3 = vector.shape_cast %2 : vector<256xf32> to vector<1x256xf32>
    %4 = arith.mulf %1, %1 : vector<64x256xf32>
    %cst_2 = arith.constant dense<0.000000e+00> : vector<256xf32>
    %5 = vector.multi_reduction <add>, %4, %cst_2 [0] : vector<64x256xf32> to vector<256xf32>
    %6 = vector.shape_cast %5 : vector<256xf32> to vector<1x256xf32>
    %cst_3 = arith.constant 1.562500e-02 : f32
    %7 = vector.broadcast %cst_3 : f32 to vector<1x256xf32>
    %8 = arith.mulf %3, %7 : vector<1x256xf32>
    %cst_4 = arith.constant 1.562500e-02 : f32
    %9 = vector.broadcast %cst_4 : f32 to vector<1x256xf32>
    %10 = arith.mulf %6, %9 : vector<1x256xf32>
    %11 = arith.mulf %8, %8 : vector<1x256xf32>
    %12 = arith.subf %10, %11 : vector<1x256xf32>
    %cst_5 = arith.constant 0.000000e+00 : f32
    %13 = vector.broadcast %cst_5 : f32 to vector<1x256xf32>
    %14 = arith.maximumf %12, %13 : vector<1x256xf32>
    %cst_6 = arith.constant 9.99999974E-6 : f32
    %15 = vector.broadcast %cst_6 : f32 to vector<1x256xf32>
    %16 = arith.addf %14, %15 : vector<1x256xf32>
    %17 = math.rsqrt %16 : vector<1x256xf32>
    %c0_7 = arith.constant 0 : index
    %c0_8 = arith.constant 0 : index
    %18 = vector.load %arg3[%c0_7, %c0_8] : memref<64x1xf32, #tpu.memory_space<vmem>>, vector<64x1xf32>
    %c0_9 = arith.constant 0 : index
    %c0_10 = arith.constant 0 : index
    %19 = vector.load %arg4[%c0_9, %c0_10] : memref<64x1xf32, #tpu.memory_space<vmem>>, vector<64x1xf32>
    %20 = vector.broadcast %8 : vector<1x256xf32> to vector<64x256xf32>
    %21 = arith.subf %1, %20 : vector<64x256xf32>
    %22 = vector.broadcast %17 : vector<1x256xf32> to vector<64x256xf32>
    %23 = arith.mulf %21, %22 : vector<64x256xf32>
    %24 = vector.broadcast %18 : vector<64x1xf32> to vector<64x256xf32>
    %25 = arith.mulf %23, %24 : vector<64x256xf32>
    %26 = vector.broadcast %19 : vector<64x1xf32> to vector<64x256xf32>
    %27 = arith.addf %25, %26 : vector<64x256xf32>
    %c0_11 = arith.constant 0 : index
    %c0_12 = arith.constant 0 : index
    %c0_13 = arith.constant 0 : index
    %28 = vector.load %arg5[%c0_11, %c0_12, %c0_13] : memref<1x64x256xf32, #tpu.memory_space<vmem>>, vector<1x64x256xf32>
    %29 = vector.shape_cast %28 : vector<1x64x256xf32> to vector<64x256xf32>
    %30 = vector.shape_cast %27 : vector<64x256xf32> to vector<1x64x256xf32>
    tpu.vector_store %arg5[%c0_11, %c0_12, %c0_13], %30 {strides = array<i32>} : memref<1x64x256xf32, #tpu.memory_space<vmem>>, vector<1x64x256xf32>,
    return
  }
  func.func @transform_0(%arg0: i32, %arg1: i32) -> (i32, i32, i32) {
    %c0_i32 = arith.constant 0 : i32
    %c0_i32_0 = arith.constant 0 : i32
    return %arg0, %c0_i32, %arg1 : i32, i32, i32
  }
  func.func @transform_1(%arg0: i32, %arg1: i32) -> (i32, i32) {
    %c0_i32 = arith.constant 0 : i32
    %c0_i32_0 = arith.constant 0 : i32
    %c0_i32_1 = arith.constant 0 : i32
    return %c0_i32, %c0_i32_0 : i32, i32
  }
  func.func @transform_2(%arg0: i32, %arg1: i32) -> (i32, i32) {
    %c0_i32 = arith.constant 0 : i32
    %c0_i32_0 = arith.constant 0 : i32
    %c0_i32_1 = arith.constant 0 : i32
    return %c0_i32, %c0_i32_0 : i32, i32
  }
  func.func @transform_3(%arg0: i32, %arg1: i32) -> (i32, i32, i32) {
    %c0_i32 = arith.constant 0 : i32
    %c0_i32_0 = arith.constant 0 : i32
    return %arg0, %c0_i32, %arg1 : i32, i32, i32
  }
}

</mosaic_0001>

<llo_original>
// kernel: layernorm_nchw.1
$region0: #{layernorm_nchw.1}
  #allocation0 [shape = 'u32[]', space=smem, size = 0x4, offset = 0x4, fixed_abs, tag = 'smem constant byte address 0x4 - core index']
  #allocation1 [shape = 'u32[144,128]{1,0:T(1,128)}', space=vmem, size = 0x12000, scoped, tag = 'internal scratch']
  %s0 = inlined_call_operand.vmem [shape: f32[2,64,256], index: 0, kind: input, shape index: {}]
  %s1 = inlined_call_operand.vmem [shape: f32[64,1], index: 1, kind: input, shape index: {}]
  %s2 = inlined_call_operand.vmem [shape: f32[64,1], index: 2, kind: input, shape index: {}]
  %s3 = inlined_call_operand.vmem [shape: f32[2,64,256], index: 3, kind: output, shape index: {}]
  %s4 = sld [smem:[#allocation0]]
  $region45: #{layernorm_nchw.1} parent=0
    _
  %s6 = ssub.s32 1, %s4
  %s7 = scalar_select 0, %s6, %s4
  loop: start=0, step=1, limit=4
  $region2: #{layernorm_nchw.1} parent=0 // loop_pre_header
    _
  $region3: #{layernorm_nchw.1} parent=0 // loop_header
    %s9 = sphi 0, %s13
    %p10 = scmp.ge.s32.totalorder %s9, 4
    %s16 = sphi 0, %s28
    %s17 = sphi 0, %s24
    %s18 = sphi 0, %s16
    %s19 = sphi 0, %s17
    %s20 = sphi 0, %s18
    %s21 = sphi 0, %s19
    %s33 = sphi 0, %s35
    %s36 = sphi 0, %s33
    %s37 = sphi 0, %s36
    %s53 = sphi 0, %s37
    %s57 = sphi 0, %s57
    %s59 = sphi 0, %s57
    %s60 = sphi 0, %s59
    %s74 = sphi 0, %s60
    %s78 = sphi 0, %s78
    %s80 = sphi 0, %s78
    %s81 = sphi 0, %s80
    %s95 = sphi 0, %s81
    %s103 = sphi 0, %s105
    %s106 = sphi 0, %s103
    %s107 = sphi 0, %s106
    %s123 = sphi 0, %s107
  $region4: #{layernorm_nchw.1} parent=0 // loop_header_branch
    %12 = sbr.rel (%p10) target = $region8
  $region5: #{layernorm_nchw.1} parent=0 // loop_body
    %s14 = ssub.s32 %s9, 1
    %s15 = ssub.s32 %s9, 2
    %s22 = sadd.s32 1, %s17
    %p23 = scmp.ge.s32.totalorder %s22, 1
    %s24 = scalar_select %p23, 0, %s22
    %s25 = sadd.s32 1, %s16
    %s26 = scalar_select %p23, %s25, %s16
    %p27 = scmp.ge.s32.totalorder %s26, 2
    %s28 = scalar_select %p27, 0, %s26
    %s29 = ssub.s32 %s16, %s28
    %s30 = ssub.s32 %s17, %s24
    %s31 = sor.u32 %s29, %s30
    %p32 = scmp.eq.s32.totalorder %s31, 0
    %s34 = sadd.s32 %s33, 1
    %s35 = scalar_select %p32, %s33, %s34
    %p38 = pneg %p32
    %p39 = scmp.eq.s32.totalorder %s9, 1
    %p40 = por %p38, %p39
    %p41 = scmp.ne.s32.totalorder %s33, %s36
    %p42 = scmp.eq.s32.totalorder %s9, 0
    %p43 = por %p41, %p42
    %p44 = scmp.ne.s32.totalorder %s33, %s36
    %p45 = scmp.eq.s32.totalorder %s14, 1
    %p46 = por %p44, %p45
    %p47 = scmp.ne.s32.totalorder %s36, %s37
    %p48 = scmp.eq.s32.totalorder %s14, 0
    %p49 = por %p47, %p48
    %p50 = scmp.ne.s32.totalorder %s36, %s37
    %p51 = scmp.eq.s32.totalorder %s15, 1
    %p52 = por %p50, %p51
    %p54 = scmp.ne.s32.totalorder %s37, %s53
    %p55 = scmp.eq.s32.totalorder %s15, 0
    %p56 = por %p54, %p55
    %s58 = sadd.s32 %s57, 1
    %p61 = scmp.eq.s32.totalorder %s9, 1
    %p62 = scmp.ne.s32.totalorder %s57, %s59
    %p63 = scmp.eq.s32.totalorder %s9, 0
    %p64 = por %p62, %p63
    %p65 = scmp.ne.s32.totalorder %s57, %s59
    %p66 = scmp.eq.s32.totalorder %s14, 1
    %p67 = por %p65, %p66
    %p68 = scmp.ne.s32.totalorder %s59, %s60
    %p69 = scmp.eq.s32.totalorder %s14, 0
    %p70 = por %p68, %p69
    %p71 = scmp.ne.s32.totalorder %s59, %s60
    %p72 = scmp.eq.s32.totalorder %s15, 1
    %p73 = por %p71, %p72
    %p75 = scmp.ne.s32.totalorder %s60, %s74
    %p76 = scmp.eq.s32.totalorder %s15, 0
    %p77 = por %p75, %p76
    %s79 = sadd.s32 %s78, 1
    %p82 = scmp.eq.s32.totalorder %s9, 1
    %p83 = scmp.ne.s32.totalorder %s78, %s80
    %p84 = scmp.eq.s32.totalorder %s9, 0
    %p85 = por %p83, %p84
    %p86 = scmp.ne.s32.totalorder %s78, %s80
    %p87 = scmp.eq.s32.totalorder %s14, 1
    %p88 = por %p86, %p87
    %p89 = scmp.ne.s32.totalorder %s80, %s81
    %p90 = scmp.eq.s32.totalorder %s14, 0
    %p91 = por %p89, %p90
    %p92 = scmp.ne.s32.totalorder %s80, %s81
    %p93 = scmp.eq.s32.totalorder %s15, 1
    %p94 = por %p92, %p93
    %p96 = scmp.ne.s32.totalorder %s81, %s95
    %p97 = scmp.eq.s32.totalorder %s15, 0
    %p98 = por %p96, %p97
    %s99 = ssub.s32 %s16, %s28
    %s100 = ssub.s32 %s17, %s24
    %s101 = sor.u32 %s99, %s100
    %p102 = scmp.eq.s32.totalorder %s101, 0
    %s104 = sadd.s32 %s103, 1
    %s105 = scalar_select %p102, %s103, %s104
    %p108 = pneg %p102
    %p109 = scmp.eq.s32.totalorder %s9, 1
    %p110 = por %p108, %p109
    %p111 = scmp.ne.s32.totalorder %s103, %s106
    %p112 = scmp.eq.s32.totalorder %s9, 0
    %p113 = por %p111, %p112
    %p114 = scmp.ne.s32.totalorder %s103, %s106
    %p115 = scmp.eq.s32.totalorder %s14, 1
    %p116 = por %p114, %p115
    %p117 = scmp.ne.s32.totalorder %s106, %s107
    %p118 = scmp.eq.s32.totalorder %s14, 0
    %p119 = por %p117, %p118
    %p120 = scmp.ne.s32.totalorder %s106, %s107
    %p121 = scmp.eq.s32.totalorder %s15, 1
    %p122 = por %p120, %p121
    %p124 = scmp.ne.s32.totalorder %s107, %s123
    %p125 = scmp.eq.s32.totalorder %s15, 0
    %p126 = por %p124, %p125
    %p127 = scmp.le.s32.totalorder 1, %s9
    %p128 = scmp.lt.s32.totalorder %s9, 3
    %p129 = pnand %p127, %p128
    %p130 = pneg %p129
    // Predicated region
    $region9: #{layernorm_nchw.1} parent=5 // pred_check
      _
    $region10: #{layernorm_nchw.1} parent=5 // pred_check_branch
      %132 = sbr.rel (%p129) target = $region12
    $region11: #{layernorm_nchw.1} parent=5 // pred_region
      %s133 = ssub.s32 %s9, 1
      // Predicated region
      $region13: #{layernorm_nchw.1} parent=11 // pred_check
        %p134 = pneg %p70
      $region14: #{layernorm_nchw.1} parent=11 // pred_check_branch
        %136 = sbr.rel (%p134) target = $region16
      $region15: #{layernorm_nchw.1} parent=11 // pred_region
        _
      $region16: #{layernorm_nchw.1} parent=11 // pred_fallthru
        _
      // Predicated region
      $region17: #{layernorm_nchw.1} parent=11 // pred_check
        %p137 = pneg %p91
      $region18: #{layernorm_nchw.1} parent=11 // pred_check_branch
        %139 = sbr.rel (%p137) target = $region20
      $region19: #{layernorm_nchw.1} parent=11 // pred_region
        _
      $region20: #{layernorm_nchw.1} parent=11 // pred_fallthru
        _
    $region12: #{layernorm_nchw.1} parent=5 // pred_fallthru
      _
    %p140 = scmp.lt.s32.totalorder %s9, 2
    // Predicated region
    $region21: #{layernorm_nchw.1} parent=5 // pred_check
      %p141 = pneg %p140
    $region22: #{layernorm_nchw.1} parent=5 // pred_check_branch
      %143 = sbr.rel (%p141) target = $region24
    $region23: #{layernorm_nchw.1} parent=5 // pred_region
      // Predicated region
      $region25: #{layernorm_nchw.1} parent=23 // pred_check
        %p144 = pneg %p43
      $region26: #{layernorm_nchw.1} parent=23 // pred_check_branch
        %146 = sbr.rel (%p144) target = $region28
      $region27: #{layernorm_nchw.1} parent=23 // pred_region
        %s147 = smul.u32 2, %s17
        %p148 = scmp.lt.s32.totalorder %s16, 1
        %s149 = scalar_select %p148, %s16, 1
        %p150 = scmp.lt.s32.totalorder %s147, 1
        %s151 = scalar_select %p150, %s147, 1
        %s152 = smul.addr %s149, 16
        %s153 = sadd.s32 %s151, %s152
        %s154 = smul.addr %s153, 8
        %s155 = scalar_lea.vmem %s0, %s154
        %s156 = smul.u32 2, %s17
      $region28: #{layernorm_nchw.1} parent=23 // pred_fallthru
        _
    $region24: #{layernorm_nchw.1} parent=5 // pred_fallthru
      _
    %p157 = scmp.le.s32.totalorder 1, %s9
    %p158 = scmp.lt.s32.totalorder %s9, 3
    %p159 = pnand %p157, %p158
    %p160 = pneg %p159
    // Predicated region
    $region29: #{layernorm_nchw.1} parent=5 // pred_check
      _
    $region30: #{layernorm_nchw.1} parent=5 // pred_check_branch
      %162 = sbr.rel (%p159) target = $region32
    $region31: #{layernorm_nchw.1} parent=5 // pred_region
      %s163 = ssub.s32 %s9, 1
      %s164 = smul.u32 2, %s19
      %p165 = scmp.lt.s32.totalorder %s18, 1
      %s166 = scalar_select %p165, %s18, 1
      %p167 = scmp.lt.s32.totalorder %s164, 1
      %s168 = scalar_select %p167, %s164, 1
      %s169 = smul.addr %s166, 16
      %s170 = sadd.s32 %s168, %s169
      %s171 = smul.addr %s170, 8
      %s172 = scalar_lea.vmem %s0, %s171
      %p173 = pneg %p49
      %p174 = pneg %p46
      %p175 = pneg %p70
      %p176 = pneg %p67
      %p177 = pneg %p91
      %p178 = pneg %p88
      %p179 = pneg %p119
      %p180 = pneg %p116
      %s181 = smul.u32 2, %s19
      %p182 = scmp.lt.s32.totalorder %s18, 1
      %s183 = scalar_select %p182, %s18, 1
      %p184 = scmp.lt.s32.totalorder %s181, 1
      %s185 = scalar_select %p184, %s181, 1
      %s186 = smul.addr %s183, 16
      %s187 = sadd.s32 %s185, %s186
      %s188 = smul.addr %s187, 8
      %s189 = scalar_lea.vmem %s3, %s188
      %s190 = smul.u32 2, %s19
      %p191 = scmp.lt.s32.totalorder %s18, 1
      %s192 = scalar_select %p191, %s18, 1
      %p193 = scmp.lt.s32.totalorder %s190, 1
      %s194 = scalar_select %p193, %s190, 1
      %s195 = smul.addr %s192, 16
      %s196 = sadd.s32 %s194, %s195
      %s197 = smul.addr %s196, 8
      %s198 = scalar_lea.vmem %s0, %s197
      %s199 = smul.u32 2, %s19
      %s200 = smul.u32 2, %s19
      %p201 = scmp.lt.s32.totalorder %s18, 1
      %s202 = scalar_select %p201, %s18, 1
      %p203 = scmp.lt.s32.totalorder %s200, 1
      %s204 = scalar_select %p203, %s200, 1
      %s205 = smul.addr %s202, 16
      %s206 = sadd.s32 %s204, %s205
      %s207 = smul.addr %s206, 8
      %s208 = scalar_lea.vmem %s3, %s207
      %s209 = smul.u32 2, %s19
      %v210 = vld [vmem:[%s198] sm:$0xff]
      %v211 = vld [vmem:[%s198 + $0x8] sm:$0xff]
      %v212 = vld [vmem:[%s198 + $0x10] sm:$0xff]
      %v213 = vld [vmem:[%s198 + $0x18] sm:$0xff]
      %v214 = vld [vmem:[%s198 + $0x20] sm:$0xff]
      %v215 = vld [vmem:[%s198 + $0x28] sm:$0xff]
      %v216 = vld [vmem:[%s198 + $0x30] sm:$0xff]
      %v217 = vld [vmem:[%s198 + $0x38] sm:$0xff]
      %v218 = vld [vmem:[%s198 + $0x40] sm:$0xff]
      %v219 = vld [vmem:[%s198 + $0x48] sm:$0xff]
      %v220 = vld [vmem:[%s198 + $0x50] sm:$0xff]
      %v221 = vld [vmem:[%s198 + $0x58] sm:$0xff]
      %v222 = vld [vmem:[%s198 + $0x60] sm:$0xff]
      %v223 = vld [vmem:[%s198 + $0x68] sm:$0xff]
      %v224 = vld [vmem:[%s198 + $0x70] sm:$0xff]
      %v225 = vld [vmem:[%s198 + $0x78] sm:$0xff]
      %v226 = vadd.f32 %v210, %v212
      %v227 = vadd.f32 %v226, %v214
      %v228 = vadd.f32 %v227, %v216
      %v229 = vadd.f32 %v228, %v218
      %v230 = vadd.f32 %v229, %v220
      %v231 = vadd.f32 %v230, %v222
      %v232 = vadd.f32 %v231, %v224
      %v233 = vrot.slane %v232, 4
      %v234 = vadd.f32 %v232, %v233
      %v235 = vrot.slane %v234, 2
      %v236 = vadd.f32 %v234, %v235
      %v237 = vrot.slane %v236, 1
      %v238 = vadd.f32 %v236, %v237
      %v239 = vadd.f32 %v211, %v213
      %v240 = vadd.f32 %v239, %v215
      %v241 = vadd.f32 %v240, %v217
      %v242 = vadd.f32 %v241, %v219
      %v243 = vadd.f32 %v242, %v221
      %v244 = vadd.f32 %v243, %v223
      %v245 = vadd.f32 %v244, %v225
      %v246 = vrot.slane %v245, 4
      %v247 = vadd.f32 %v245, %v246
      %v248 = vrot.slane %v247, 2
      %v249 = vadd.f32 %v247, %v248
      %v250 = vrot.slane %v249, 1
      %v251 = vadd.f32 %v249, %v250
      %v252 = vmul.f32 %v210, %v210
      %v253 = vmul.f32 %v211, %v211
      %v254 = vmul.f32 %v212, %v212
      %v255 = vmul.f32 %v213, %v213
      %v256 = vmul.f32 %v214, %v214
      %v257 = vmul.f32 %v215, %v215
      %v258 = vmul.f32 %v216, %v216
      %v259 = vmul.f32 %v217, %v217
      %v260 = vmul.f32 %v218, %v218
      %v261 = vmul.f32 %v219, %v219
      %v262 = vmul.f32 %v220, %v220
      %v263 = vmul.f32 %v221, %v221
      %v264 = vmul.f32 %v222, %v222
      %v265 = vmul.f32 %v223, %v223
      %v266 = vmul.f32 %v224, %v224
      %v267 = vmul.f32 %v225, %v225
      %v268 = vadd.f32 %v252, %v254
      %v269 = vadd.f32 %v268, %v256
      %v270 = vadd.f32 %v269, %v258
      %v271 = vadd.f32 %v270, %v260
      %v272 = vadd.f32 %v271, %v262
      %v273 = vadd.f32 %v272, %v264
      %v274 = vadd.f32 %v273, %v266
      %v275 = vrot.slane %v274, 4
      %v276 = vadd.f32 %v274, %v275
      %v277 = vrot.slane %v276, 2
      %v278 = vadd.f32 %v276, %v277
      %v279 = vrot.slane %v278, 1
      %v280 = vadd.f32 %v278, %v279
      %v281 = vadd.f32 %v253, %v255
      %v282 = vadd.f32 %v281, %v257
      %v283 = vadd.f32 %v282, %v259
      %v284 = vadd.f32 %v283, %v261
      %v285 = vadd.f32 %v284, %v263
      %v286 = vadd.f32 %v285, %v265
      %v287 = vadd.f32 %v286, %v267
      %v288 = vrot.slane %v287, 4
      %v289 = vadd.f32 %v287, %v288
      %v290 = vrot.slane %v289, 2
      %v291 = vadd.f32 %v289, %v290
      %v292 = vrot.slane %v291, 1
      %v293 = vadd.f32 %v291, %v292
      %v294 = vmul.f32 %v238, 0.015625
      %v295 = vmul.f32 %v251, 0.015625
      %v296 = vmul.f32 %v280, 0.015625
      %v297 = vmul.f32 %v293, 0.015625
      %v298 = vmul.f32 %v294, %v294
      %v299 = vmul.f32 %v295, %v295
      %v300 = vsub.f32 %v296, %v298
      %v301 = vsub.f32 %v297, %v299
      %v302 = vmax.f32 %v300, 0.0
      %v303 = vmax.f32 %v301, 0.0
      %v304 = vadd.f32 %v302, 1e-05
      %v305 = vadd.f32 %v303, 1e-05
      %v306 = vrsqrt.pop %v304
      %v307 = vrsqrt.pop %v305
      %v308 = vld [vmem:[%s1] sm:$0xff]
      %v309 = vld [vmem:[%s1 + $0x8] sm:$0xff]
      %v310 = vld [vmem:[%s1 + $0x10] sm:$0xff]
      %v311 = vld [vmem:[%s1 + $0x18] sm:$0xff]
      %v312 = vld [vmem:[%s1 + $0x20] sm:$0xff]
      %v313 = vld [vmem:[%s1 + $0x28] sm:$0xff]
      %v314 = vld [vmem:[%s1 + $0x30] sm:$0xff]
      %v315 = vld [vmem:[%s1 + $0x38] sm:$0xff]
      %v316 = vld [vmem:[%s2] sm:$0xff]
      %v317 = vld [vmem:[%s2 + $0x8] sm:$0xff]
      %v318 = vld [vmem:[%s2 + $0x10] sm:$0xff]
      %v319 = vld [vmem:[%s2 + $0x18] sm:$0xff]
      %v320 = vld [vmem:[%s2 + $0x20] sm:$0xff]
      %v321 = vld [vmem:[%s2 + $0x28] sm:$0xff]
      %v322 = vld [vmem:[%s2 + $0x30] sm:$0xff]
      %v323 = vld [vmem:[%s2 + $0x38] sm:$0xff]
      %v324 = vsub.f32 %v210, %v294
      %v325 = vsub.f32 %v211, %v295
      %v326 = vsub.f32 %v212, %v294
      %v327 = vsub.f32 %v213, %v295
      %v328 = vsub.f32 %v214, %v294
      %v329 = vsub.f32 %v215, %v295
      %v330 = vsub.f32 %v216, %v294
      %v331 = vsub.f32 %v217, %v295
      %v332 = vsub.f32 %v218, %v294
      %v333 = vsub.f32 %v219, %v295
      %v334 = vsub.f32 %v220, %v294
      %v335 = vsub.f32 %v221, %v295
      %v336 = vsub.f32 %v222, %v294
      %v337 = vsub.f32 %v223, %v295
      %v338 = vsub.f32 %v224, %v294
      %v339 = vsub.f32 %v225, %v295
      %v340 = vmul.f32 %v324, %v306
      %v341 = vmul.f32 %v325, %v307
      %v342 = vmul.f32 %v326, %v306
      %v343 = vmul.f32 %v327, %v307
      %v344 = vmul.f32 %v328, %v306
      %v345 = vmul.f32 %v329, %v307
      %v346 = vmul.f32 %v330, %v306
      %v347 = vmul.f32 %v331, %v307
      %v348 = vmul.f32 %v332, %v306
      %v349 = vmul.f32 %v333, %v307
      %v350 = vmul.f32 %v334, %v306
      %v351 = vmul.f32 %v335, %v307
      %v352 = vmul.f32 %v336, %v306
      %v353 = vmul.f32 %v337, %v307
      %v354 = vmul.f32 %v338, %v306
      %v355 = vmul.f32 %v339, %v307
      %357 = vset.pattern.permute.xlu0 0
      %358 = vperm.xlu0 %357, %v308
      %v359 = vpop.permute.xlu0 %358
      %362 = vset.pattern.permute.xlu0 0
      %363 = vperm.xlu0 %362, %v309
      %v364 = vpop.permute.xlu0 %363
      %367 = vset.pattern.permute.xlu0 0
      %368 = vperm.xlu0 %367, %v310
      %v369 = vpop.permute.xlu0 %368
      %372 = vset.pattern.permute.xlu0 0
      %373 = vperm.xlu0 %372, %v311
      %v374 = vpop.permute.xlu0 %373
      %377 = vset.pattern.permute.xlu0 0
      %378 = vperm.xlu0 %377, %v312
      %v379 = vpop.permute.xlu0 %378
      %382 = vset.pattern.permute.xlu0 0
      %383 = vperm.xlu0 %382, %v313
      %v384 = vpop.permute.xlu0 %383
      %387 = vset.pattern.permute.xlu0 0
      %388 = vperm.xlu0 %387, %v314
      %v389 = vpop.permute.xlu0 %388
      %392 = vset.pattern.permute.xlu0 0
      %393 = vperm.xlu0 %392, %v315
      %v394 = vpop.permute.xlu0 %393
      %v396 = vmul.f32 %v340, %v359
      %v397 = vmul.f32 %v341, %v359
      %v398 = vmul.f32 %v342, %v364
      %v399 = vmul.f32 %v343, %v364
      %v400 = vmul.f32 %v344, %v369
      %v401 = vmul.f32 %v345, %v369
      %v402 = vmul.f32 %v346, %v374
      %v403 = vmul.f32 %v347, %v374
      %v404 = vmul.f32 %v348, %v379
      %v405 = vmul.f32 %v349, %v379
      %v406 = vmul.f32 %v350, %v384
      %v407 = vmul.f32 %v351, %v384
      %v408 = vmul.f32 %v352, %v389
      %v409 = vmul.f32 %v353, %v389
      %v410 = vmul.f32 %v354, %v394
      %v411 = vmul.f32 %v355, %v394
      %413 = vset.pattern.permute.xlu0 0
      %414 = vperm.xlu0 %413, %v316
      %v415 = vpop.permute.xlu0 %414
      %418 = vset.pattern.permute.xlu0 0
      %419 = vperm.xlu0 %418, %v317
      %v420 = vpop.permute.xlu0 %419
      %423 = vset.pattern.permute.xlu0 0
      %424 = vperm.xlu0 %423, %v318
      %v425 = vpop.permute.xlu0 %424
      %428 = vset.pattern.permute.xlu0 0
      %429 = vperm.xlu0 %428, %v319
      %v430 = vpop.permute.xlu0 %429
      %433 = vset.pattern.permute.xlu0 0
      %434 = vperm.xlu0 %433, %v320
      %v435 = vpop.permute.xlu0 %434
      %438 = vset.pattern.permute.xlu0 0
      %439 = vperm.xlu0 %438, %v321
      %v440 = vpop.permute.xlu0 %439
      %443 = vset.pattern.permute.xlu0 0
      %444 = vperm.xlu0 %443, %v322
      %v445 = vpop.permute.xlu0 %444
      %448 = vset.pattern.permute.xlu0 0
      %449 = vperm.xlu0 %448, %v323
      %v450 = vpop.permute.xlu0 %449
      %v452 = vadd.f32 %v396, %v415
      %v453 = vadd.f32 %v397, %v415
      %v454 = vadd.f32 %v398, %v420
      %v455 = vadd.f32 %v399, %v420
      %v456 = vadd.f32 %v400, %v425
      %v457 = vadd.f32 %v401, %v425
      %v458 = vadd.f32 %v402, %v430
      %v459 = vadd.f32 %v403, %v430
      %v460 = vadd.f32 %v404, %v435
      %v461 = vadd.f32 %v405, %v435
      %v462 = vadd.f32 %v406, %v440
      %v463 = vadd.f32 %v407, %v440
      %v464 = vadd.f32 %v408, %v445
      %v465 = vadd.f32 %v409, %v445
      %v466 = vadd.f32 %v410, %v450
      %v467 = vadd.f32 %v411, %v450
      %468 = vst [vmem:[%s208] sm:$0xff] %v452
      %469 = vst [vmem:[%s208 + $0x8] sm:$0xff] %v453
      %470 = vst [vmem:[%s208 + $0x10] sm:$0xff] %v454
      %471 = vst [vmem:[%s208 + $0x18] sm:$0xff] %v455
      %472 = vst [vmem:[%s208 + $0x20] sm:$0xff] %v456
      %473 = vst [vmem:[%s208 + $0x28] sm:$0xff] %v457
      %474 = vst [vmem:[%s208 + $0x30] sm:$0xff] %v458
      %475 = vst [vmem:[%s208 + $0x38] sm:$0xff] %v459
      %476 = vst [vmem:[%s208 + $0x40] sm:$0xff] %v460
      %477 = vst [vmem:[%s208 + $0x48] sm:$0xff] %v461
      %478 = vst [vmem:[%s208 + $0x50] sm:$0xff] %v462
      %479 = vst [vmem:[%s208 + $0x58] sm:$0xff] %v463
      %480 = vst [vmem:[%s208 + $0x60] sm:$0xff] %v464
      %481 = vst [vmem:[%s208 + $0x68] sm:$0xff] %v465
      %482 = vst [vmem:[%s208 + $0x70] sm:$0xff] %v466
      %483 = vst [vmem:[%s208 + $0x78] sm:$0xff] %v467
      %s484 = smul.u32 2, %s19
      %p485 = scmp.lt.s32.totalorder %s18, 1
      %s486 = scalar_select %p485, %s18, 1
      %p487 = scmp.lt.s32.totalorder %s484, 1
      %s488 = scalar_select %p487, %s484, 1
      %s489 = smul.addr %s486, 16
      %s490 = sadd.s32 %s488, %s489
      %s491 = smul.addr %s490, 8
      %s492 = scalar_lea.vmem %s3, %s491
      // Predicated region
      $region33: #{layernorm_nchw.1} parent=31 // pred_check
        %p493 = pneg %p116
      $region34: #{layernorm_nchw.1} parent=31 // pred_check_branch
        %495 = sbr.rel (%p493) target = $region36
      $region35: #{layernorm_nchw.1} parent=31 // pred_region
        %s496 = smul.u32 2, %s19
      $region36: #{layernorm_nchw.1} parent=31 // pred_fallthru
        _
    $region32: #{layernorm_nchw.1} parent=5 // pred_fallthru
      _
    %p497 = scmp.le.s32.totalorder 2, %s9
    // Predicated region
    $region37: #{layernorm_nchw.1} parent=5 // pred_check
      %p498 = pneg %p497
    $region38: #{layernorm_nchw.1} parent=5 // pred_check_branch
      %500 = sbr.rel (%p498) target = $region40
    $region39: #{layernorm_nchw.1} parent=5 // pred_region
      %s501 = ssub.s32 %s9, 2
      // Predicated region
      $region41: #{layernorm_nchw.1} parent=39 // pred_check
        %p502 = pneg %p122
      $region42: #{layernorm_nchw.1} parent=39 // pred_check_branch
        %504 = sbr.rel (%p502) target = $region44
      $region43: #{layernorm_nchw.1} parent=39 // pred_region
        %s505 = smul.u32 2, %s21
        %p506 = scmp.lt.s32.totalorder %s20, 1
        %s507 = scalar_select %p506, %s20, 1
        %p508 = scmp.lt.s32.totalorder %s505, 1
        %s509 = scalar_select %p508, %s505, 1
        %s510 = smul.addr %s507, 16
        %s511 = sadd.s32 %s509, %s510
        %s512 = smul.addr %s511, 8
        %s513 = scalar_lea.vmem %s3, %s512
      $region44: #{layernorm_nchw.1} parent=39 // pred_fallthru
        _
    $region40: #{layernorm_nchw.1} parent=5 // pred_fallthru
      _
  $region6: #{layernorm_nchw.1} parent=0 // loop_footer
    %s13 = sadd.s32 1, %s9
  $region7: #{layernorm_nchw.1} parent=0 // loop_footer_branch
    %8 = sbr.rel target = $region3
  $region8: #{layernorm_nchw.1} parent=0 // loop_exit
    _

</llo_original>
